<compile_context>
chip_gen: v6e
topology: v6e:2x2x1
jax: 0.10.0
libtpu: 0.0.40
codegen_flags: <defaults>
</compile_context>

<pallas_src>
from functools import partial

import jax
import jax.numpy as jnp
import numpy as np
from jax import lax
from jax.experimental import pallas as pl
from jax.experimental.pallas import tpu as pltpu


def sinusoidal_pe(length, d_model, dtype=jnp.float32):
    # TODO(synk): PositionEmbeddingSine's exact definition was not provided with
    # the module; a standard additive 1D sine/cosine positional encoding is used.
    pos = jnp.arange(length, dtype=jnp.float32)[:, None]
    i = jnp.arange(d_model // 2, dtype=jnp.float32)[None, :]
    div = jnp.power(10000.0, 2.0 * i / d_model)
    ang = pos / div
    pe = jnp.zeros((length, d_model), jnp.float32)
    pe = pe.at[:, 0::2].set(jnp.sin(ang))
    pe = pe.at[:, 1::2].set(jnp.cos(ang))
    return pe.astype(dtype)


def _mha_position_kernel(x_ref, w_ref, peb_ref, *rest, num_head, d_head,
                         fused, use_fori):
    """rest = (P,) or (e_fold, e_spread) head-mixing matrices, then o_ref."""
    o_ref = rest[-1]
    head_refs = rest[:-1]
    d_model = num_head * d_head
    lane_dense = (d_model % 128 == 0)

    # Fused QKV projection on the MXU: (TM, D) @ (D, 3D), f32 accumulation.
    # The 1/sqrt(d_head) scale lives in the Q columns of W; biases and the sine
    # position embedding (Q/K only) live in the resident additive block `peb`.
    xb = x_ref[...].astype(w_ref.dtype)      # what the MXU bf16 pass does anyway
    qkv = jnp.dot(xb, w_ref[...], preferred_element_type=jnp.float32)
    qkv = qkv + peb_ref[...].astype(jnp.float32)

    q = qkv[:, 0:d_model]                    # postin(w_q(x)) / sqrt(d_head)
    k = qkv[:, d_model:2 * d_model]          # postin(w_k(x))
    v = qkv[:, 2 * d_model:3 * d_model]      # w_v(x)

    def rot(a, shift):
        # Lane rotation by a multiple of d_head = cyclic head-block permutation.
        # Direction is irrelevant to correctness: k and v use the same rotation
        # and r sweeps every offset exactly once.
        if isinstance(shift, int):
            shift = shift % d_model
            if shift == 0:
                return a
            if not lane_dense:
                # Fallback for d_model not a multiple of 128 (masked-lane layout).
                return jnp.concatenate([a[:, shift:], a[:, :shift]], axis=1)
        return pltpu.roll(a, shift=shift, axis=1)   # XLU vrot, overlaps MXU/VPU

    if fused:
        # (D, D) block-diagonal 0/1 matrix: segmented lane sum + broadcast back
        # in a single full-width MXU matmul (best on the 256-wide v6e/v7x MXU).
        p_ref = head_refs[0]

        def contrib(qk):
            return jnp.dot(qk, p_ref[...], preferred_element_type=jnp.float32)
    else:
        # (D, H) fold then (H, D) spread 0/1 matrices (cheaper on 128-wide MXU).
        ef_ref, eb_ref = head_refs

        def contrib(qk):
            s = jnp.dot(qk, ef_ref[...], preferred_element_type=jnp.float32)
            return jnp.dot(s, eb_ref[...], preferred_element_type=jnp.float32)

    # Per-token head mixing: out_i = sum_j (q_i . k_j) * v_j, grouped by head
    # rotation offset r so every pass is full-width VPU/MXU work: no narrow
    # slices, no cross-lane reductions, no masked partial stores.
    def step(r, acc):
        shift = r * d_head
        k_r = rot(k, shift)
        v_r = rot(v, shift)
        return acc + contrib(q * k_r) * v_r

    acc = jnp.zeros_like(q)
    if use_fori:
        # Large num_head: a visible loop bounds live ranges / vreg pressure.
        acc = lax.fori_loop(0, num_head, step, acc, unroll=2)
    else:
        for r in range(num_head):
            acc = step(r, acc)

    # Single lane-dense store of the whole (TM, D) tile.
    o_ref[...] = acc.astype(o_ref.dtype)


def _prefer_fused_head_matmul(d_model):
    """One full-width (D,D) block-diagonal matmul vs. the (D,H)+(H,D) pair.
    Worth it on the 256-wide MXU of v6e/v7x for D <= 512; the pair stays
    cheaper on the 128-wide MXU of v5e and older, and for large D."""
    if d_model > 512:
        return False
    try:
        kind = jax.devices()[0].device_kind.lower()
    except Exception:
        return True
    if any(v in kind for v in ("v2", "v3", "v4", "v5")):
        return False
    return True


def _vmem_budget_bytes():
    """~75% of per-core VMEM; conservatively assume v7x's 64 MiB if undetectable."""
    cap = 64 * 1024 * 1024
    try:
        cap = int(getattr(pltpu.get_tpu_info(), "vmem_capacity_bytes", cap))
    except Exception:
        pass
    return int(cap) * 3 // 4


def _pick_tile_m(M, L, target, fits):
    """Row tile: divides M, compatible with the PE block layout (multiple or
    divisor of L) and with the (8, 128) tiling rule.  Preference order:
    fits VMEM budget > >=2 grid steps (keeps both v7x TensorCores busy)
    > <= target (amortize ~0.35 us/step overhead without blowing VMEM)
    > as large as possible."""
    valid = [t for t in range(1, M + 1)
             if M % t == 0
             and (t % L == 0 or L % t == 0)
             and (t % 8 == 0 or t == M)]
    return max(valid, key=lambda t: (fits(t), M // t >= 2, t <= target, t))


def multhead_position_forward(x, params, num_head, tile_m_target=512):
    """x: (B, L, d_model).  params: (wq, bq, wk, bk, wv, bv), each w* of shape
    (d_model, d_model) (kernel computes x @ W + b) and b* of shape (1, d_model).
    d_model should be a multiple of 128 for fully lane-dense layout; other
    sizes still work via a masked/concatenate fallback."""
    B, L, D = x.shape
    assert D % num_head == 0, "d_model must be divisible by num_head"
    d_head = D // num_head
    M = B * L
    scale = 1.0 / (float(d_head) ** 0.5)

    # MXU default precision is a single bf16 pass, so bf16 params cost nothing
    # extra in accuracy while halving DMA bytes and resident VMEM.
    compute_dtype = jnp.bfloat16 if x.dtype == jnp.float32 else x.dtype

    fused = _prefer_fused_head_matmul(D)
    use_fori = (num_head >= 8) and (D % 128 == 0)

    # --- VMEM budgeting: double-buffered operands + in-kernel f32 temporaries ---
    bc = jnp.dtype(compute_dtype).itemsize
    bx = jnp.dtype(x.dtype).itemsize
    head_bytes = (D * D * 4) if fused else (2 * D * num_head * 4)

    def est_vmem(t):
        return (2 * t * D * bx                 # x tile (double-buffered)
                + 2 * t * D * bx               # out tile (double-buffered)
                + 2 * D * 3 * D * bc           # resident packed W_qkv
                + 2 * t * 3 * D * bc           # resident (pe + bias) block
                + 2 * head_bytes               # head-mixing 0/1 matrices
                + 12 * t * D * 4)              # in-kernel f32 values (qkv, q/k/v,
                                               # rotated pair, q*k_r, acc, ...)

    budget = _vmem_budget_bytes()
    tile_m = _pick_tile_m(M, L, tile_m_target, lambda t: est_vmem(t) <= budget)

    # --- operands ---
    wq, bq, wk, bk, wv, bv = params
    # Packed (D, 3D) projection with 1/sqrt(d_head) folded into the Q columns.
    w_qkv = jnp.concatenate([wq * scale, wk, wv], axis=1).astype(compute_dtype)

    # (pe + bias) additive block, pre-scaled on the Q third.  The (M, 3D) term is
    # never materialized: only an (L or tile_m, 3D) block is streamed/resident.
    pe_L = sinusoidal_pe(L, D, jnp.float32)
    if tile_m % L == 0:
        pe_blk = jnp.tile(pe_L, (tile_m // L, 1))      # identical for every tile
        peb_index = lambda i: (0, 0)
    else:  # L % tile_m == 0 (guaranteed by _pick_tile_m)
        rep = L // tile_m
        pe_blk = pe_L
        peb_index = lambda i: (i % rep, 0)
    b_row = jnp.concatenate([bq * scale, bk, bv], axis=1)              # (1, 3D)
    peb = jnp.concatenate([pe_blk * scale, pe_blk, jnp.zeros_like(pe_blk)],
                          axis=1) + b_row
    peb = peb.astype(compute_dtype)
    peb_spec = pl.BlockSpec((tile_m, 3 * D), peb_index)

    # Constant 0/1 head-block matrices (kept f32: they feed the MXU next to f32
    # values, avoiding per-step up-casts; tiny and resident).
    head_of_lane = jnp.arange(D) // d_head
    e_fold = (head_of_lane[:, None] == jnp.arange(num_head)[None, :]
              ).astype(jnp.float32)
    if fused:
        head_ops = (e_fold @ e_fold.T,)                      # (D, D) block-diagonal
        head_specs = [pl.BlockSpec((D, D), lambda i: (0, 0))]
    else:
        head_ops = (e_fold, e_fold.T)
        head_specs = [pl.BlockSpec((D, num_head), lambda i: (0, 0)),
                      pl.BlockSpec((num_head, D), lambda i: (0, 0))]

    x2 = x.reshape(M, D)
    kernel = partial(_mha_position_kernel, num_head=num_head, d_head=d_head,
                     fused=fused, use_fori=use_fori)

    cp_kwargs = dict(dimension_semantics=("parallel",))
    est = est_vmem(tile_m)
    if est > 16 * 1024 * 1024:
        # Raise the scoped VMEM limit, keeping headroom below physical VMEM
        # (<= ~48 MiB on v7x's 64 MiB parts; more on 128 MiB v5e/v6e).
        cp_kwargs["vmem_limit_bytes"] = int(min(max(est * 5 // 4,
                                                    32 * 1024 * 1024), budget))
    # NOTE: on v7x the constant-index operands (W_qkv, peb, head matrices) could
    # additionally be single-buffered (BlockSpec pipeline_mode=pl.Buffered(1)) to
    # halve their VMEM share; default double-buffering is kept for portability.

    out = pl.pallas_call(
        kernel,
        out_shape=jax.ShapeDtypeStruct((M, D), x.dtype),
        grid_spec=pltpu.PrefetchScalarGridSpec(
            num_scalar_prefetch=0,
            grid=(M // tile_m,),
            in_specs=[
                pl.BlockSpec((tile_m, D), lambda i: (i, 0)),   # x row tile
                pl.BlockSpec((D, 3 * D), lambda i: (0, 0)),    # packed W_qkv (resident)
                peb_spec,                                      # pe + bias block (resident)
                *head_specs,                                   # head-mixing 0/1 matrices
            ],
            out_specs=pl.BlockSpec((tile_m, D), lambda i: (i, 0)),
        ),
        compiler_params=pltpu.CompilerParams(**cp_kwargs),
    )(x2, w_qkv, peb, *head_ops)
    return out.reshape(B, L, D)


def reference_forward(x, params, num_head):
    """Pure-JAX f32 reference mirroring the PyTorch module exactly."""
    B, L, D = x.shape
    dh = D // num_head
    wq, bq, wk, bk, wv, bv = params
    pe = sinusoidal_pe(L, D)[None]
    q = x @ wq + bq + pe
    k = x @ wk + bk + pe
    v = x @ wv + bv
    qh = q.reshape(B, L, num_head, dh)
    kh = k.reshape(B, L, num_head, dh)
    vh = v.reshape(B, L, num_head, dh)
    a = jnp.einsum('blht,blgt->blhg', qh, kh) / jnp.sqrt(jnp.float32(dh))
    b = jnp.einsum('blhg,blgt->blht', a, vh)
    return b.reshape(B, L, D)


if __name__ == "__main__":
    # d_model = 128: a lane-dense hidden size (multiple of 128) per the review;
    # B=2, L=16, H=4 heads of d_head=32 keep the demo small (grid of 2 tiles).
    B, L, D, H = 2, 16, 128, 4

    key = jax.random.PRNGKey(0)
    kx, kwq, kbq, kwk, kbk, kwv, kbv = jax.random.split(key, 7)
    x = jax.random.normal(kx, (B, L, D), dtype=jnp.float32)

    # Deterministic synthetic parameters (nn.Linear(d_model, d_model) x3),
    # stored as (D_in, D_out) so the kernel computes x @ W + b.
    params = (
        jax.random.normal(kwq, (D, D), jnp.float32) * 0.1,
        jax.random.normal(kbq, (1, D), jnp.float32) * 0.1,
        jax.random.normal(kwk, (D, D), jnp.float32) * 0.1,
        jax.random.normal(kbk, (1, D), jnp.float32) * 0.1,
        jax.random.normal(kwv, (D, D), jnp.float32) * 0.1,
        jax.random.normal(kbv, (1, D), jnp.float32) * 0.1,
    )

    out = jax.block_until_ready(multhead_position_forward(x, params, num_head=H))
    ref = jax.block_until_ready(reference_forward(x, params, num_head=H))

    # Tolerance absorbs the bf16 parameter cast + default-precision (bf16-pass)
    # MXU dots vs. the f32 XLA reference; genuine algorithmic errors (wrong head
    # pairing, missing scale, missing PE) would show up as O(1) differences.
    np.testing.assert_allclose(np.asarray(out, np.float32),
                               np.asarray(ref, np.float32),
                               atol=8e-2, rtol=5e-2)

    print("KERNEL_OK")
</pallas_src>

<mosaic_0001>
module attributes {stable_mosaic.version = 11 : i64} {
  func.func @_mha_position_kernel(%arg0: i32, %arg1: memref<16x128xf32, #tpu.memory_space<vmem>>, %arg2: memref<128x384xbf16, #tpu.memory_space<vmem>>, %arg3: memref<16x384xbf16, #tpu.memory_space<vmem>>, %arg4: memref<128x128xf32, #tpu.memory_space<vmem>>, %arg5: memref<16x128xf32, #tpu.memory_space<vmem>>) attributes {dimension_semantics = [#tpu.dimension_semantics<parallel>], iteration_bounds = array<i64: 2>, scalar_prefetch = 0 : i64, scratch_operands = 0 : i64, tpu.core_type = #tpu.core_type<tc>, window_params = [{transform_indices = @transform_0, window_bounds = array<i64: 16, 128>}, {pipeline_mode = #tpu.pipeline_mode<synchronous>, transform_indices = @transform_1, window_bounds = array<i64: 128, 384>}, {pipeline_mode = #tpu.pipeline_mode<synchronous>, transform_indices = @transform_2, window_bounds = array<i64: 16, 384>}, {pipeline_mode = #tpu.pipeline_mode<synchronous>, transform_indices = @transform_3, window_bounds = array<i64: 128, 128>}, {transform_indices = @transform_4, window_bounds = array<i64: 16, 128>}]} {
    %c0 = arith.constant 0 : index
    %c0_0 = arith.constant 0 : index
    %0 = vector.load %arg1[%c0, %c0_0] : memref<16x128xf32, #tpu.memory_space<vmem>>, vector<16x128xf32>
    %1 = arith.truncf %0 : vector<16x128xf32> to vector<16x128xbf16>
    %c0_1 = arith.constant 0 : index
    %c0_2 = arith.constant 0 : index
    %2 = vector.load %arg2[%c0_1, %c0_2] : memref<128x384xbf16, #tpu.memory_space<vmem>>, vector<128x384xbf16>
    %cst = arith.constant dense<0.000000e+00> : vector<16x384xf32>
    %3 = tpu.matmul %1, %2, %cst {dimension_numbers = #tpu.dot_dimension_numbers<[1], [0], [0], [1], [0, 0, 1, 1], [], []>} : vector<16x128xbf16>, vector<128x384xbf16>, vector<16x384xf32> -> vector<16x384xf32>
    %c0_3 = arith.constant 0 : index
    %c0_4 = arith.constant 0 : index
    %4 = vector.load %arg3[%c0_3, %c0_4] : memref<16x384xbf16, #tpu.memory_space<vmem>>, vector<16x384xbf16>
    %5 = arith.extf %4 : vector<16x384xbf16> to vector<16x384xf32>
    %6 = arith.addf %3, %5 : vector<16x384xf32>
    %7 = vector.extract_strided_slice %6 {offsets = [0, 0], sizes = [16, 128], strides = [1, 1]} : vector<16x384xf32> to vector<16x128xf32>
    %8 = vector.extract_strided_slice %6 {offsets = [0, 128], sizes = [16, 128], strides = [1, 1]} : vector<16x384xf32> to vector<16x128xf32>
    %9 = vector.extract_strided_slice %6 {offsets = [0, 256], sizes = [16, 128], strides = [1, 1]} : vector<16x384xf32> to vector<16x128xf32>
    %cst_5 = arith.constant 0.000000e+00 : f32
    %10 = vector.broadcast %cst_5 : f32 to vector<16x128xf32>
    %11 = arith.mulf %7, %8 : vector<16x128xf32>
    %c0_6 = arith.constant 0 : index
    %c0_7 = arith.constant 0 : index
    %12 = vector.load %arg4[%c0_6, %c0_7] : memref<128x128xf32, #tpu.memory_space<vmem>>, vector<128x128xf32>
    %cst_8 = arith.constant dense<0.000000e+00> : vector<16x128xf32>
    %13 = tpu.matmul %11, %12, %cst_8 {dimension_numbers = #tpu.dot_dimension_numbers<[1], [0], [0], [1], [0, 0, 1, 1], [], []>} : vector<16x128xf32>, vector<128x128xf32>, vector<16x128xf32> -> vector<16x128xf32>
    %14 = arith.mulf %13, %9 : vector<16x128xf32>
    %15 = arith.addf %10, %14 : vector<16x128xf32>
    %c32_i32 = arith.constant 32 : i32
    %16 = tpu.dynamic_rotate %8 by %c32_i32 dim 1 : vector<16x128xf32>, i32 -> vector<16x128xf32>
    %c32_i32_9 = arith.constant 32 : i32
    %17 = tpu.dynamic_rotate %9 by %c32_i32_9 dim 1 : vector<16x128xf32>, i32 -> vector<16x128xf32>
    %18 = arith.mulf %7, %16 : vector<16x128xf32>
    %c0_10 = arith.constant 0 : index
    %c0_11 = arith.constant 0 : index
    %19 = vector.load %arg4[%c0_10, %c0_11] : memref<128x128xf32, #tpu.memory_space<vmem>>, vector<128x128xf32>
    %cst_12 = arith.constant dense<0.000000e+00> : vector<16x128xf32>
    %20 = tpu.matmul %18, %19, %cst_12 {dimension_numbers = #tpu.dot_dimension_numbers<[1], [0], [0], [1], [0, 0, 1, 1], [], []>} : vector<16x128xf32>, vector<128x128xf32>, vector<16x128xf32> -> vector<16x128xf32>
    %21 = arith.mulf %20, %17 : vector<16x128xf32>
    %22 = arith.addf %15, %21 : vector<16x128xf32>
    %c64_i32 = arith.constant 64 : i32
    %23 = tpu.dynamic_rotate %8 by %c64_i32 dim 1 : vector<16x128xf32>, i32 -> vector<16x128xf32>
    %c64_i32_13 = arith.constant 64 : i32
    %24 = tpu.dynamic_rotate %9 by %c64_i32_13 dim 1 : vector<16x128xf32>, i32 -> vector<16x128xf32>
    %25 = arith.mulf %7, %23 : vector<16x128xf32>
    %c0_14 = arith.constant 0 : index
    %c0_15 = arith.constant 0 : index
    %26 = vector.load %arg4[%c0_14, %c0_15] : memref<128x128xf32, #tpu.memory_space<vmem>>, vector<128x128xf32>
    %cst_16 = arith.constant dense<0.000000e+00> : vector<16x128xf32>
    %27 = tpu.matmul %25, %26, %cst_16 {dimension_numbers = #tpu.dot_dimension_numbers<[1], [0], [0], [1], [0, 0, 1, 1], [], []>} : vector<16x128xf32>, vector<128x128xf32>, vector<16x128xf32> -> vector<16x128xf32>
    %28 = arith.mulf %27, %24 : vector<16x128xf32>
    %29 = arith.addf %22, %28 : vector<16x128xf32>
    %c96_i32 = arith.constant 96 : i32
    %30 = tpu.dynamic_rotate %8 by %c96_i32 dim 1 : vector<16x128xf32>, i32 -> vector<16x128xf32>
    %c96_i32_17 = arith.constant 96 : i32
    %31 = tpu.dynamic_rotate %9 by %c96_i32_17 dim 1 : vector<16x128xf32>, i32 -> vector<16x128xf32>
    %32 = arith.mulf %7, %30 : vector<16x128xf32>
    %c0_18 = arith.constant 0 : index
    %c0_19 = arith.constant 0 : index
    %33 = vector.load %arg4[%c0_18, %c0_19] : memref<128x128xf32, #tpu.memory_space<vmem>>, vector<128x128xf32>
    %cst_20 = arith.constant dense<0.000000e+00> : vector<16x128xf32>
    %34 = tpu.matmul %32, %33, %cst_20 {dimension_numbers = #tpu.dot_dimension_numbers<[1], [0], [0], [1], [0, 0, 1, 1], [], []>} : vector<16x128xf32>, vector<128x128xf32>, vector<16x128xf32> -> vector<16x128xf32>
    %35 = arith.mulf %34, %31 : vector<16x128xf32>
    %36 = arith.addf %29, %35 : vector<16x128xf32>
    %c0_21 = arith.constant 0 : index
    %c0_22 = arith.constant 0 : index
    %37 = vector.load %arg5[%c0_21, %c0_22] : memref<16x128xf32, #tpu.memory_space<vmem>>, vector<16x128xf32>
    tpu.vector_store %arg5[%c0_21, %c0_22], %36 {strides = array<i32>} : memref<16x128xf32, #tpu.memory_space<vmem>>, vector<16x128xf32>,
    return
  }
  func.func @transform_0(%arg0: i32) -> (i32, i32) {
    %c0_i32 = arith.constant 0 : i32
    %c0_i32_0 = arith.constant 0 : i32
    return %arg0, %c0_i32 : i32, i32
  }
  func.func @transform_1(%arg0: i32) -> (i32, i32) {
    %c0_i32 = arith.constant 0 : i32
    %c0_i32_0 = arith.constant 0 : i32
    %c0_i32_1 = arith.constant 0 : i32
    return %c0_i32, %c0_i32_0 : i32, i32
  }
  func.func @transform_2(%arg0: i32) -> (i32, i32) {
    %c0_i32 = arith.constant 0 : i32
    %c0_i32_0 = arith.constant 0 : i32
    %c0_i32_1 = arith.constant 0 : i32
    return %c0_i32, %c0_i32_0 : i32, i32
  }
  func.func @transform_3(%arg0: i32) -> (i32, i32) {
    %c0_i32 = arith.constant 0 : i32
    %c0_i32_0 = arith.constant 0 : i32
    %c0_i32_1 = arith.constant 0 : i32
    return %c0_i32, %c0_i32_0 : i32, i32
  }
  func.func @transform_4(%arg0: i32) -> (i32, i32) {
    %c0_i32 = arith.constant 0 : i32
    %c0_i32_0 = arith.constant 0 : i32
    return %arg0, %c0_i32 : i32, i32
  }
}

</mosaic_0001>

<llo_original>
// kernel: tpu_custom_call.1
$region0: #{tpu_custom_call.1}
  #allocation0 [shape = 'u32[]', space=smem, size = 0x4, offset = 0x4, fixed_abs, tag = 'smem constant byte address 0x4 - core index']
  #allocation1 [shape = 'u32[144,128]{1,0:T(1,128)}', space=vmem, size = 0x12000, scoped, tag = 'internal scratch']
  %s0 = inlined_call_operand.hbm [shape: f32[32,128], index: 0, kind: input, shape index: {}]
  %s1 = inlined_call_operand.hbm [shape: bf16[128,384], index: 1, kind: input, shape index: {}]
  %s2 = inlined_call_operand.hbm [shape: bf16[16,384], index: 2, kind: input, shape index: {}]
  %s3 = inlined_call_operand.hbm [shape: f32[128,128], index: 3, kind: input, shape index: {}]
  %s4 = inlined_call_operand.hbm [shape: f32[32,128], index: 4, kind: output, shape index: {}]
  %s5 = sld [smem:[#allocation0]]
  $region65: #{tpu_custom_call.1} parent=0
    _
  %s7 = ssub.s32 1, %s5
  %s8 = scalar_select 0, %s7, %s5
  $region1: #{tpu_custom_call.1} parent=0
    #allocation2 [shape = 'u8[16384]{0}', space=vmem, size = 0x4000, scoped, tag = 'input window, operand 0']
    #allocation3 [shape = 's32[2]{0}', space=sflag, size = 0x8, scoped, tag = 'scoped memory for tpu_custom_call.1']
    #allocation4 [shape = 's32[2]{0}', space=sflag, size = 0x8, scoped, tag = 'scoped memory for tpu_custom_call.1']
    #allocation5 [shape = 'u8[98304]{0}', space=vmem, size = 0x18000, scoped, tag = 'input window, operand 1, single buffered']
    #allocation6 [shape = 's32[1]{0}', space=sflag, size = 0x4, scoped, tag = 'scoped memory for tpu_custom_call.1']
    #allocation7 [shape = 'u8[12288]{0}', space=vmem, size = 0x3000, scoped, tag = 'input window, operand 2, single buffered']
    #allocation8 [shape = 'u8[65536]{0}', space=vmem, size = 0x10000, scoped, tag = 'input window, operand 3, single buffered']
    #allocation9 [shape = 's32[1]{0}', space=sflag, size = 0x4, scoped, tag = 'scoped memory for tpu_custom_call.1']
    #allocation10 [shape = 'u8[16384]{0}', space=vmem, size = 0x4000, scoped, tag = 'output window, operand 0']
    %9 = vsyncpa [#allocation3], 0
    %s10 = scalar_lea.sflag [#allocation3], 1
    %11 = vsyncpa %s10, 0
    %12 = vsyncpa [#allocation6], 0
    %13 = vsyncpa [#allocation9], 0
    %14 = vsyncpa [#allocation4], 0
    %s15 = scalar_lea.sflag [#allocation4], 1
    %16 = vsyncpa %s15, 0
    loop: start=0, step=1, limit=4
    $region2: #{tpu_custom_call.1} parent=1 // loop_pre_header
      _
    $region3: #{tpu_custom_call.1} parent=1 // loop_header
      %s18 = sphi 0, %s22
      %p19 = scmp.ge.s32.totalorder %s18, 4
      %s28 = sphi 0, %s30
      %s31 = sphi 0, %s28
      %s32 = sphi 0, %s31
      %s48 = sphi 0, %s32
      %s52 = sphi 0, %s52
      %s54 = sphi 0, %s52
      %s55 = sphi 0, %s54
      %s69 = sphi 0, %s55
      %s73 = sphi 0, %s73
      %s75 = sphi 0, %s73
      %s76 = sphi 0, %s75
      %s90 = sphi 0, %s76
      %s94 = sphi 0, %s94
      %s96 = sphi 0, %s94
      %s97 = sphi 0, %s96
      %s111 = sphi 0, %s97
      %s117 = sphi 0, %s119
      %s120 = sphi 0, %s117
      %s121 = sphi 0, %s120
      %s137 = sphi 0, %s121
    $region4: #{tpu_custom_call.1} parent=1 // loop_header_branch
      %21 = sbr.rel (%p19) target = $region8
    $region5: #{tpu_custom_call.1} parent=1 // loop_body
      %s23 = ssub.s32 %s18, 1
      %s24 = ssub.s32 %s18, 2
      %s25 = sadd.s32 %s18, 1
      %s26 = ssub.s32 %s18, %s25
      %p27 = scmp.eq.s32.totalorder %s26, 0
      %s29 = sadd.s32 %s28, 1
      %s30 = scalar_select %p27, %s28, %s29
      %p33 = pneg %p27
      %p34 = scmp.eq.s32.totalorder %s18, 1
      %p35 = por %p33, %p34
      %p36 = scmp.ne.s32.totalorder %s28, %s31
      %p37 = scmp.eq.s32.totalorder %s18, 0
      %p38 = por %p36, %p37
      %p39 = scmp.ne.s32.totalorder %s28, %s31
      %p40 = scmp.eq.s32.totalorder %s23, 1
      %p41 = por %p39, %p40
      %p42 = scmp.ne.s32.totalorder %s31, %s32
      %p43 = scmp.eq.s32.totalorder %s23, 0
      %p44 = por %p42, %p43
      %p45 = scmp.ne.s32.totalorder %s31, %s32
      %p46 = scmp.eq.s32.totalorder %s24, 1
      %p47 = por %p45, %p46
      %p49 = scmp.ne.s32.totalorder %s32, %s48
      %p50 = scmp.eq.s32.totalorder %s24, 0
      %p51 = por %p49, %p50
      %s53 = sadd.s32 %s52, 1
      %p56 = scmp.eq.s32.totalorder %s18, 1
      %p57 = scmp.ne.s32.totalorder %s52, %s54
      %p58 = scmp.eq.s32.totalorder %s18, 0
      %p59 = por %p57, %p58
      %p60 = scmp.ne.s32.totalorder %s52, %s54
      %p61 = scmp.eq.s32.totalorder %s23, 1
      %p62 = por %p60, %p61
      %p63 = scmp.ne.s32.totalorder %s54, %s55
      %p64 = scmp.eq.s32.totalorder %s23, 0
      %p65 = por %p63, %p64
      %p66 = scmp.ne.s32.totalorder %s54, %s55
      %p67 = scmp.eq.s32.totalorder %s24, 1
      %p68 = por %p66, %p67
      %p70 = scmp.ne.s32.totalorder %s55, %s69
      %p71 = scmp.eq.s32.totalorder %s24, 0
      %p72 = por %p70, %p71
      %s74 = sadd.s32 %s73, 1
      %p77 = scmp.eq.s32.totalorder %s18, 1
      %p78 = scmp.ne.s32.totalorder %s73, %s75
      %p79 = scmp.eq.s32.totalorder %s18, 0
      %p80 = por %p78, %p79
      %p81 = scmp.ne.s32.totalorder %s73, %s75
      %p82 = scmp.eq.s32.totalorder %s23, 1
      %p83 = por %p81, %p82
      %p84 = scmp.ne.s32.totalorder %s75, %s76
      %p85 = scmp.eq.s32.totalorder %s23, 0
      %p86 = por %p84, %p85
      %p87 = scmp.ne.s32.totalorder %s75, %s76
      %p88 = scmp.eq.s32.totalorder %s24, 1
      %p89 = por %p87, %p88
      %p91 = scmp.ne.s32.totalorder %s76, %s90
      %p92 = scmp.eq.s32.totalorder %s24, 0
      %p93 = por %p91, %p92
      %s95 = sadd.s32 %s94, 1
      %p98 = scmp.eq.s32.totalorder %s18, 1
      %p99 = scmp.ne.s32.totalorder %s94, %s96
      %p100 = scmp.eq.s32.totalorder %s18, 0
      %p101 = por %p99, %p100
      %p102 = scmp.ne.s32.totalorder %s94, %s96
      %p103 = scmp.eq.s32.totalorder %s23, 1
      %p104 = por %p102, %p103
      %p105 = scmp.ne.s32.totalorder %s96, %s97
      %p106 = scmp.eq.s32.totalorder %s23, 0
      %p107 = por %p105, %p106
      %p108 = scmp.ne.s32.totalorder %s96, %s97
      %p109 = scmp.eq.s32.totalorder %s24, 1
      %p110 = por %p108, %p109
      %p112 = scmp.ne.s32.totalorder %s97, %s111
      %p113 = scmp.eq.s32.totalorder %s24, 0
      %p114 = por %p112, %p113
      %s115 = ssub.s32 %s18, %s25
      %p116 = scmp.eq.s32.totalorder %s115, 0
      %s118 = sadd.s32 %s117, 1
      %s119 = scalar_select %p116, %s117, %s118
      %p122 = pneg %p116
      %p123 = scmp.eq.s32.totalorder %s18, 1
      %p124 = por %p122, %p123
      %p125 = scmp.ne.s32.totalorder %s117, %s120
      %p126 = scmp.eq.s32.totalorder %s18, 0
      %p127 = por %p125, %p126
      %p128 = scmp.ne.s32.totalorder %s117, %s120
      %p129 = scmp.eq.s32.totalorder %s23, 1
      %p130 = por %p128, %p129
      %p131 = scmp.ne.s32.totalorder %s120, %s121
      %p132 = scmp.eq.s32.totalorder %s23, 0
      %p133 = por %p131, %p132
      %p134 = scmp.ne.s32.totalorder %s120, %s121
      %p135 = scmp.eq.s32.totalorder %s24, 1
      %p136 = por %p134, %p135
      %p138 = scmp.ne.s32.totalorder %s121, %s137
      %p139 = scmp.eq.s32.totalorder %s24, 0
      %p140 = por %p138, %p139
      %p141 = scmp.le.s32.totalorder 1, %s18
      %p142 = scmp.lt.s32.totalorder %s18, 3
      %p143 = pnand %p141, %p142
      %p144 = pneg %p143
      // Predicated region
      $region9: #{tpu_custom_call.1} parent=5 // pred_check
        _
      $region10: #{tpu_custom_call.1} parent=5 // pred_check_branch
        %146 = sbr.rel (%p143) target = $region12
      $region11: #{tpu_custom_call.1} parent=5 // pred_region
        %s147 = ssub.s32 %s18, 1
        // Predicated region
        $region13: #{tpu_custom_call.1} parent=11 // pred_check
          %p148 = pneg %p65
        $region14: #{tpu_custom_call.1} parent=11 // pred_check_branch
          %150 = sbr.rel (%p148) target = $region16
        $region15: #{tpu_custom_call.1} parent=11 // pred_region
          %s152 = ssub.s32 3072, 3072
          %153 = vsyncadd [#allocation6], %s152
          %s154 = sshll.u32 [#allocation5], 4
          %s155 = int_to_ptr.vmem [resolvable:$true] %s154
          %160 = dma.hbm_to_vmem [thread:$0]  %s1, 3072, %s155, [#allocation6], 192, 192, 12
        $region16: #{tpu_custom_call.1} parent=11 // pred_fallthru
          _
        // Predicated region
        $region17: #{tpu_custom_call.1} parent=11 // pred_check
          %p161 = pneg %p86
        $region18: #{tpu_custom_call.1} parent=11 // pred_check_branch
          %163 = sbr.rel (%p161) target = $region20
        $region19: #{tpu_custom_call.1} parent=11 // pred_region
          %s165 = ssub.s32 384, 384
          %166 = vsyncadd [#allocation6], %s165
          %s167 = sshll.u32 [#allocation7], 4
          %s168 = int_to_ptr.vmem [resolvable:$true] %s167
          %173 = dma.hbm_to_vmem [thread:$0]  %s2, 384, %s168, [#allocation6], 192, 192, 12
        $region20: #{tpu_custom_call.1} parent=11 // pred_fallthru
          _
        // Predicated region
        $region21: #{tpu_custom_call.1} parent=11 // pred_check
          %p174 = pneg %p107
        $region22: #{tpu_custom_call.1} parent=11 // pred_check_branch
          %176 = sbr.rel (%p174) target = $region24
        $region23: #{tpu_custom_call.1} parent=11 // pred_region
          %s178 = ssub.s32 2048, 2048
          %179 = vsyncadd [#allocation9], %s178
          %s180 = sshll.u32 [#allocation8], 4
          %s181 = int_to_ptr.vmem [resolvable:$true] %s180
          %186 = dma.hbm_to_vmem [thread:$0]  %s3, 2048, %s181, [#allocation9], 128, 128, 8
        $region24: #{tpu_custom_call.1} parent=11 // pred_fallthru
          _
      $region12: #{tpu_custom_call.1} parent=5 // pred_fallthru
        _
      %p187 = scmp.lt.s32.totalorder %s18, 2
      // Predicated region
      $region25: #{tpu_custom_call.1} parent=5 // pred_check
        %p188 = pneg %p187
      $region26: #{tpu_custom_call.1} parent=5 // pred_check_branch
        %190 = sbr.rel (%p188) target = $region28
      $region27: #{tpu_custom_call.1} parent=5 // pred_region
        // Predicated region
        $region29: #{tpu_custom_call.1} parent=27 // pred_check
          %p191 = pneg %p38
        $region30: #{tpu_custom_call.1} parent=27 // pred_check_branch
          %193 = sbr.rel (%p191) target = $region32
        $region31: #{tpu_custom_call.1} parent=27 // pred_region
          %s194 = sand.u32 %s28, 1
          %s195 = scalar_lea.sflag [#allocation3], %s194
          %s196 = sand.u32 %s28, 1
          %s197 = smul.addr %s196, 16
          %s198 = scalar_lea.vmem [#allocation2], %s197
          %s199 = smul.u32 2, %s18
          %s201 = ssub.s32 256, 256
          %202 = vsyncadd %s195, %s201
          %s203 = smul.addr %s199, 128
          %s204 = scalar_lea.hbm %s0, %s203
          %s205 = sshll.u32 %s198, 4
          %s206 = int_to_ptr.vmem [resolvable:$true] %s205
          %211 = dma.hbm_to_vmem [thread:$0]  %s204, 256, %s206, %s195, 128, 128, 8
        $region32: #{tpu_custom_call.1} parent=27 // pred_fallthru
          _
      $region28: #{tpu_custom_call.1} parent=5 // pred_fallthru
        _
      %p212 = scmp.le.s32.totalorder 1, %s18
      %p213 = scmp.lt.s32.totalorder %s18, 3
      %p214 = pnand %p212, %p213
      %p215 = pneg %p214
      // Predicated region
      $region33: #{tpu_custom_call.1} parent=5 // pred_check
        _
      $region34: #{tpu_custom_call.1} parent=5 // pred_check_branch
        %217 = sbr.rel (%p214) target = $region36
      $region35: #{tpu_custom_call.1} parent=5 // pred_region
        %s218 = ssub.s32 %s18, 1
        %s219 = sand.u32 %s31, 1
        %s220 = scalar_lea.sflag [#allocation3], %s219
        %s221 = sand.u32 %s31, 1
        %s222 = smul.addr %s221, 16
        %s223 = scalar_lea.vmem [#allocation2], %s222
        // Predicated region
        $region37: #{tpu_custom_call.1} parent=35 // pred_check
          %p224 = pneg %p44
        $region38: #{tpu_custom_call.1} parent=35 // pred_check_branch
          %226 = sbr.rel (%p224) target = $region40
        $region39: #{tpu_custom_call.1} parent=35 // pred_region
          %227 = dma.done %s220, 256
        $region40: #{tpu_custom_call.1} parent=35 // pred_fallthru
          _
        // Predicated region
        $region41: #{tpu_custom_call.1} parent=35 // pred_check
          %p228 = pneg %p65
        $region42: #{tpu_custom_call.1} parent=35 // pred_check_branch
          %230 = sbr.rel (%p228) target = $region44
        $region43: #{tpu_custom_call.1} parent=35 // pred_region
          %231 = dma.done [#allocation6], 3072
        $region44: #{tpu_custom_call.1} parent=35 // pred_fallthru
          _
        // Predicated region
        $region45: #{tpu_custom_call.1} parent=35 // pred_check
          %p232 = pneg %p86
        $region46: #{tpu_custom_call.1} parent=35 // pred_check_branch
          %234 = sbr.rel (%p232) target = $region48
        $region47: #{tpu_custom_call.1} parent=35 // pred_region
          %235 = dma.done [#allocation6], 384
        $region48: #{tpu_custom_call.1} parent=35 // pred_fallthru
          _
        // Predicated region
        $region49: #{tpu_custom_call.1} parent=35 // pred_check
          %p236 = pneg %p107
        $region50: #{tpu_custom_call.1} parent=35 // pred_check_branch
          %238 = sbr.rel (%p236) target = $region52
        $region51: #{tpu_custom_call.1} parent=35 // pred_region
          %239 = dma.done [#allocation9], 2048
        $region52: #{tpu_custom_call.1} parent=35 // pred_fallthru
          _
        %s240 = sand.u32 %s31, 1
        %s241 = scalar_lea.sflag [#allocation3], %s240
        %s242 = sand.u32 %s31, 1
        %s243 = smul.addr %s242, 16
        %s244 = scalar_lea.vmem [#allocation2], %s243
        %p245 = pneg %p44
        %p246 = pneg %p41
        %p247 = pneg %p65
        %p248 = pneg %p62
        %p249 = pneg %p86
        %p250 = pneg %p83
        %p251 = pneg %p107
        %p252 = pneg %p104
        %p253 = pneg %p133
        %p254 = pneg %p130
        %s255 = sand.u32 %s120, 1
        %s256 = scalar_lea.sflag [#allocation4], %s255
        %s257 = sand.u32 %s120, 1
        %s258 = smul.addr %s257, 16
        %s259 = scalar_lea.vmem [#allocation10], %s258
        %s260 = smul.u32 2, %s23
        %s261 = smul.u32 2, %s23
        %v263 = vld [vmem:[%s223] sm:$0xff]
        %v264 = vld [vmem:[%s223 + $0x8] sm:$0xff]
        %v265 = vpack.c.bf16 %v264, %v263
        %v266 = vld [vmem:[#allocation5] sm:$0xff]
        %v267 = vld [vmem:[#allocation5 + $0x8] sm:$0xf]
        %v268 = vld [vmem:[#allocation5 + $0xc] sm:$0xff]
        %v269 = vld [vmem:[#allocation5 + $0x14] sm:$0xf]
        %v270 = vld [vmem:[#allocation5 + $0x18] sm:$0xff]
        %v271 = vld [vmem:[#allocation5 + $0x20] sm:$0xf]
        %v272 = vld [vmem:[#allocation5 + $0x24] sm:$0xff]
        %v273 = vld [vmem:[#allocation5 + $0x2c] sm:$0xf]
        %v274 = vld [vmem:[#allocation5 + $0x30] sm:$0xff]
        %v275 = vld [vmem:[#allocation5 + $0x38] sm:$0xf]
        %v276 = vld [vmem:[#allocation5 + $0x3c] sm:$0xff]
        %v277 = vld [vmem:[#allocation5 + $0x44] sm:$0xf]
        %v278 = vld [vmem:[#allocation5 + $0x48] sm:$0xff]
        %v279 = vld [vmem:[#allocation5 + $0x50] sm:$0xf]
        %v280 = vld [vmem:[#allocation5 + $0x54] sm:$0xff]
        %v281 = vld [vmem:[#allocation5 + $0x5c] sm:$0xf]
        %v282 = vld [vmem:[#allocation5 + $0x60] sm:$0xff]
        %v283 = vld [vmem:[#allocation5 + $0x68] sm:$0xf]
        %v284 = vld [vmem:[#allocation5 + $0x6c] sm:$0xff]
        %v285 = vld [vmem:[#allocation5 + $0x74] sm:$0xf]
        %v286 = vld [vmem:[#allocation5 + $0x78] sm:$0xff]
        %v287 = vld [vmem:[#allocation5 + $0x80] sm:$0xf]
        %v288 = vld [vmem:[#allocation5 + $0x84] sm:$0xff]
        %v289 = vld [vmem:[#allocation5 + $0x8c] sm:$0xf]
        %v290 = vld [vmem:[#allocation5 + $0x90] sm:$0xff]
        %v291 = vld [vmem:[#allocation5 + $0x98] sm:$0xf]
        %v292 = vld [vmem:[#allocation5 + $0x9c] sm:$0xff]
        %v293 = vld [vmem:[#allocation5 + $0xa4] sm:$0xf]
        %v294 = vld [vmem:[#allocation5 + $0xa8] sm:$0xff]
        %v295 = vld [vmem:[#allocation5 + $0xb0] sm:$0xf]
        %v296 = vld [vmem:[#allocation5 + $0xb4] sm:$0xff]
        %v297 = vld [vmem:[#allocation5 + $0xbc] sm:$0xf]
        %v298 = vld [vmem:[#allocation7] sm:$0xff]
        %v299 = vld [vmem:[#allocation7 + $0x8] sm:$0xf]
        %v300 = vld [vmem:[#allocation7 + $0xc] sm:$0xff]
        %v301 = vld [vmem:[#allocation7 + $0x14] sm:$0xf]
        %v302 = vunpack.c.l.bf16 %v298
        %v303 = vunpack.c.h.bf16 %v298
        %v304 = vunpack.c.l.bf16 %v299
        %v305 = vunpack.c.l.bf16 %v300
        %v306 = vunpack.c.h.bf16 %v300
        %v307 = vunpack.c.l.bf16 %v301
        %v340 = vunpack.c.l.b16 %v266
        %v341 = vunpack.c.h.b16 %v266
        %v342 = vunpack.c.l.b16 %v267
        %v343 = vunpack.c.l.b16 %v268
        %v344 = vunpack.c.h.b16 %v268
        %v345 = vunpack.c.l.b16 %v269
        %v346 = vunpack.c.l.b16 %v270
        %v347 = vunpack.c.h.b16 %v270
        %v348 = vunpack.c.l.b16 %v271
        %v349 = vunpack.c.l.b16 %v272
        %v350 = vunpack.c.h.b16 %v272
        %v351 = vunpack.c.l.b16 %v273
        %v352 = vunpack.c.l.b16 %v274
        %v353 = vunpack.c.h.b16 %v274
        %v354 = vunpack.c.l.b16 %v275
        %v355 = vunpack.c.l.b16 %v276
        %v356 = vunpack.c.h.b16 %v276
        %v357 = vunpack.c.l.b16 %v277
        %v358 = vunpack.c.l.b16 %v278
        %v359 = vunpack.c.h.b16 %v278
        %v360 = vunpack.c.l.b16 %v279
        %v361 = vunpack.c.l.b16 %v280
        %v362 = vunpack.c.h.b16 %v280
        %v363 = vunpack.c.l.b16 %v281
        %v364 = vunpack.c.l.b16 %v282
        %v365 = vunpack.c.h.b16 %v282
        %v366 = vunpack.c.l.b16 %v283
        %v367 = vunpack.c.l.b16 %v284
        %v368 = vunpack.c.h.b16 %v284
        %v369 = vunpack.c.l.b16 %v285
        %v370 = vunpack.c.l.b16 %v286
        %v371 = vunpack.c.h.b16 %v286
        %v372 = vunpack.c.l.b16 %v287
        %v373 = vunpack.c.l.b16 %v288
        %v374 = vunpack.c.h.b16 %v288
        %v375 = vunpack.c.l.b16 %v289
        %v376 = vunpack.c.l.b16 %v290
        %v377 = vunpack.c.h.b16 %v290
        %v378 = vunpack.c.l.b16 %v291
        %v379 = vunpack.c.l.b16 %v292
        %v380 = vunpack.c.h.b16 %v292
        %v381 = vunpack.c.l.b16 %v293
        %v382 = vunpack.c.l.b16 %v294
        %v383 = vunpack.c.h.b16 %v294
        %v384 = vunpack.c.l.b16 %v295
        %v385 = vunpack.c.l.b16 %v296
        %v386 = vunpack.c.h.b16 %v296
        %v387 = vunpack.c.l.b16 %v297
        %v388 = vpack.c.b16 %v343, %v340
        %v389 = vpack.c.b16 %v344, %v341
        %v390 = vpack.c.b16 %v345, %v342
        %v391 = vpack.c.b16 %v349, %v346
        %v392 = vpack.c.b16 %v350, %v347
        %v393 = vpack.c.b16 %v351, %v348
        %v394 = vpack.c.b16 %v355, %v352
        %v395 = vpack.c.b16 %v356, %v353
        %v396 = vpack.c.b16 %v357, %v354
        %v397 = vpack.c.b16 %v361, %v358
        %v398 = vpack.c.b16 %v362, %v359
        %v399 = vpack.c.b16 %v363, %v360
        %v400 = vpack.c.b16 %v367, %v364
        %v401 = vpack.c.b16 %v368, %v365
        %v402 = vpack.c.b16 %v369, %v366
        %v403 = vpack.c.b16 %v373, %v370
        %v404 = vpack.c.b16 %v374, %v371
        %v405 = vpack.c.b16 %v375, %v372
        %v406 = vpack.c.b16 %v379, %v376
        %v407 = vpack.c.b16 %v380, %v377
        %v408 = vpack.c.b16 %v381, %v378
        %v409 = vpack.c.b16 %v385, %v382
        %v410 = vpack.c.b16 %v386, %v383
        %v411 = vpack.c.b16 %v387, %v384
        %436 = vmatprep.subr.bf16.mxu0 %v410
        %437 = vmatpush1.bf16.msra.mxu0 %v409
        %438 = vmatprep.subr.bf16.mxu0 %v407
        %439 = vmatpush1.bf16.msra.mxu0 %v406
        %440 = vmatprep.subr.bf16.mxu0 %v404
        %441 = vmatpush1.bf16.msra.mxu0 %v403
        %442 = vmatprep.subr.bf16.mxu0 %v401
        %443 = vmatpush1.bf16.msra.mxu0 %v400
        %444 = vmatprep.subr.bf16.mxu0 %v398
        %445 = vmatpush1.bf16.msra.mxu0 %v397
        %446 = vmatprep.subr.bf16.mxu0 %v395
        %447 = vmatpush1.bf16.msra.mxu0 %v394
        %448 = vmatprep.subr.bf16.mxu0 %v392
        %449 = vmatpush1.bf16.msra.mxu0 %v391
        %450 = vmatprep.subr.bf16.mxu0 %v389
        %451 = vmatpush1.bf16.msra.mxu0 %v388
        %452 = vmatprep.subr.bf16.mxu0 0
        %453 = vmatpush2.bf16.msra.mxu0 0
        %454 = vmatprep.subr.bf16.mxu0 0
        %455 = vmatpush2.bf16.msra.mxu0 0
        %456 = vmatprep.subr.bf16.mxu0 0
        %457 = vmatpush2.bf16.msra.mxu0 0
        %458 = vmatprep.subr.bf16.mxu0 0
        %459 = vmatpush2.bf16.msra.mxu0 0
        %460 = vmatprep.subr.bf16.mxu0 0
        %461 = vmatpush2.bf16.msra.mxu0 0
        %462 = vmatprep.subr.bf16.mxu0 0
        %463 = vmatpush2.bf16.msra.mxu0 0
        %464 = vmatprep.subr.bf16.mxu0 0
        %465 = vmatpush2.bf16.msra.mxu0 0
        %466 = vmatprep.subr.bf16.mxu0 0
        %467 = vmatpush2.bf16.msra.mxu0 0
        %468 = vmatprep.mubr.bf16.mxu0 0
        %469 = vmatmul.mubr.bf16.gmra.mxu0 %v265
        %v470 = vpop.f32.mrf.mxu0
        %v471 = vadd.f32 %v302, %v470
        %v472 = vpop.f32.mrf.mxu0
        %v473 = vadd.f32 %v303, %v472
        %v474 = vpop.f32.mrf.mxu0
        %v475 = vadd.f32 %v305, %v474
        %v476 = vpop.f32.mrf.mxu0
        %v477 = vadd.f32 %v306, %v476
        %478 = vdwg.mxu0
        %479 = vmatprep.subr.bf16.mxu0 0
        %480 = vmatpush1.bf16.msra.mxu0 %v411
        %481 = vmatprep.subr.bf16.mxu0 0
        %482 = vmatpush1.bf16.msra.mxu0 %v408
        %483 = vmatprep.subr.bf16.mxu0 0
        %484 = vmatpush1.bf16.msra.mxu0 %v405
        %485 = vmatprep.subr.bf16.mxu0 0
        %486 = vmatpush1.bf16.msra.mxu0 %v402
        %487 = vmatprep.subr.bf16.mxu0 0
        %488 = vmatpush1.bf16.msra.mxu0 %v399
        %489 = vmatprep.subr.bf16.mxu0 0
        %490 = vmatpush1.bf16.msra.mxu0 %v396
        %491 = vmatprep.subr.bf16.mxu0 0
        %492 = vmatpush1.bf16.msra.mxu0 %v393
        %493 = vmatprep.subr.bf16.mxu0 0
        %494 = vmatpush1.bf16.msra.mxu0 %v390
        %495 = vmatprep.subr.bf16.mxu0 0
        %496 = vmatpush2.bf16.msra.mxu0 0
        %497 = vmatprep.subr.bf16.mxu0 0
        %498 = vmatpush2.bf16.msra.mxu0 0
        %499 = vmatprep.subr.bf16.mxu0 0
        %500 = vmatpush2.bf16.msra.mxu0 0
        %501 = vmatprep.subr.bf16.mxu0 0
        %502 = vmatpush2.bf16.msra.mxu0 0
        %503 = vmatprep.subr.bf16.mxu0 0
        %504 = vmatpush2.bf16.msra.mxu0 0
        %505 = vmatprep.subr.bf16.mxu0 0
        %506 = vmatpush2.bf16.msra.mxu0 0
        %507 = vmatprep.subr.bf16.mxu0 0
        %508 = vmatpush2.bf16.msra.mxu0 0
        %509 = vmatprep.subr.bf16.mxu0 0
        %510 = vmatpush2.bf16.msra.mxu0 0
        %511 = vmatprep.mubr.bf16.mxu0 0
        %512 = vmatmul.mubr.bf16.gmra.mxu0 %v265
        %v513 = vpop.f32.mrf.mxu0
        %v514 = vadd.f32 %v304, %v513
        %v515 = vpop.f32.mrf.mxu0
        %v516 = vpop.f32.mrf.mxu0
        %v517 = vadd.f32 %v307, %v516
        %v518 = vpop.f32.mrf.mxu0
        %519 = vdwg.mxu0
        %v520 = vmul.f32 %v471, %v473
        %v521 = vmul.f32 %v475, %v477
        %v522 = vld [vmem:[#allocation8] sm:$0xff]
        %v523 = vld [vmem:[#allocation8 + $0x8] sm:$0xff]
        %v524 = vld [vmem:[#allocation8 + $0x10] sm:$0xff]
        %v525 = vld [vmem:[#allocation8 + $0x18] sm:$0xff]
        %v526 = vld [vmem:[#allocation8 + $0x20] sm:$0xff]
        %v527 = vld [vmem:[#allocation8 + $0x28] sm:$0xff]
        %v528 = vld [vmem:[#allocation8 + $0x30] sm:$0xff]
        %v529 = vld [vmem:[#allocation8 + $0x38] sm:$0xff]
        %v530 = vld [vmem:[#allocation8 + $0x40] sm:$0xff]
        %v531 = vld [vmem:[#allocation8 + $0x48] sm:$0xff]
        %v532 = vld [vmem:[#allocation8 + $0x50] sm:$0xff]
        %v533 = vld [vmem:[#allocation8 + $0x58] sm:$0xff]
        %v534 = vld [vmem:[#allocation8 + $0x60] sm:$0xff]
        %v535 = vld [vmem:[#allocation8 + $0x68] sm:$0xff]
        %v536 = vld [vmem:[#allocation8 + $0x70] sm:$0xff]
        %v537 = vld [vmem:[#allocation8 + $0x78] sm:$0xff]
        %538 = vmatprep.subr.mxu0 0.0
        %539 = vmatpush1.msra.mxu0 %v537
        %540 = vmatprep.subr.mxu0 0.0
        %541 = vmatpush1.msra.mxu0 %v536
        %542 = vmatprep.subr.mxu0 0.0
        %543 = vmatpush1.msra.mxu0 %v535
        %544 = vmatprep.subr.mxu0 0.0
        %545 = vmatpush1.msra.mxu0 %v534
        %546 = vmatprep.subr.mxu0 0.0
        %547 = vmatpush1.msra.mxu0 %v533
        %548 = vmatprep.subr.mxu0 0.0
        %549 = vmatpush1.msra.mxu0 %v532
        %550 = vmatprep.subr.mxu0 0.0
        %551 = vmatpush1.msra.mxu0 %v531
        %552 = vmatprep.subr.mxu0 0.0
        %553 = vmatpush1.msra.mxu0 %v530
        %554 = vmatprep.subr.mxu0 0.0
        %555 = vmatpush1.msra.mxu0 %v529
        %556 = vmatprep.subr.mxu0 0.0
        %557 = vmatpush1.msra.mxu0 %v528
        %558 = vmatprep.subr.mxu0 0.0
        %559 = vmatpush1.msra.mxu0 %v527
        %560 = vmatprep.subr.mxu0 0.0
        %561 = vmatpush1.msra.mxu0 %v526
        %562 = vmatprep.subr.mxu0 0.0
        %563 = vmatpush1.msra.mxu0 %v525
        %564 = vmatprep.subr.mxu0 0.0
        %565 = vmatpush1.msra.mxu0 %v524
        %566 = vmatprep.subr.mxu0 0.0
        %567 = vmatpush1.msra.mxu0 %v523
        %568 = vmatprep.subr.mxu0 0.0
        %569 = vmatpush1.msra.mxu0 %v522
        %570 = vmatprep.subr.mxu0 0.0
        %571 = vmatpush2.msra.mxu0 0.0
        %572 = vmatprep.subr.mxu0 0.0
        %573 = vmatpush2.msra.mxu0 0.0
        %574 = vmatprep.subr.mxu0 0.0
        %575 = vmatpush2.msra.mxu0 0.0
        %576 = vmatprep.subr.mxu0 0.0
        %577 = vmatpush2.msra.mxu0 0.0
        %578 = vmatprep.subr.mxu0 0.0
        %579 = vmatpush2.msra.mxu0 0.0
        %580 = vmatprep.subr.mxu0 0.0
        %581 = vmatpush2.msra.mxu0 0.0
        %582 = vmatprep.subr.mxu0 0.0
        %583 = vmatpush2.msra.mxu0 0.0
        %584 = vmatprep.subr.mxu0 0.0
        %585 = vmatpush2.msra.mxu0 0.0
        %586 = vmatprep.subr.mxu0 0.0
        %587 = vmatpush2.msra.mxu0 0.0
        %588 = vmatprep.subr.mxu0 0.0
        %589 = vmatpush2.msra.mxu0 0.0
        %590 = vmatprep.subr.mxu0 0.0
        %591 = vmatpush2.msra.mxu0 0.0
        %592 = vmatprep.subr.mxu0 0.0
        %593 = vmatpush2.msra.mxu0 0.0
        %594 = vmatprep.subr.mxu0 0.0
        %595 = vmatpush2.msra.mxu0 0.0
        %596 = vmatprep.subr.mxu0 0.0
        %597 = vmatpush2.msra.mxu0 0.0
        %598 = vmatprep.subr.mxu0 0.0
        %599 = vmatpush2.msra.mxu0 0.0
        %600 = vmatprep.subr.mxu0 0.0
        %601 = vmatpush2.msra.mxu0 0.0
        %602 = vmatprep.mubr.f32.mxu0 0.0
        %603 = vmatmul.mubr.f32.gmra.mxu0 %v520
        %v604 = vpop.f32.mrf.mxu0
        %v605 = vadd.f32 0.0, %v604
        %v606 = vpop.f32.mrf.mxu0
        %607 = vmatprep.mubr.f32.mxu0 0.0
        %608 = vmatmul.mubr.f32.gmra.mxu0 %v521
        %v609 = vpop.f32.mrf.mxu0
        %v610 = vadd.f32 0.0, %v609
        %v611 = vpop.f32.mrf.mxu0
        %612 = vdwg.mxu0
        %v613 = vmul.f32 %v605, %v514
        %v614 = vmul.f32 %v610, %v517
        %v615 = vadd.f32 %v613, 0.0
        %v616 = vadd.f32 %v614, 0.0
        %617 = vrot.lane.b32.xlu0 %v473, 32
        %v618 = vpop.permute.xlu0 %617
        %619 = vrot.lane.b32.xlu0 %v477, 32
        %v620 = vpop.permute.xlu0 %619
        %621 = vrot.lane.b32.xlu0 %v514, 32
        %v622 = vpop.permute.xlu0 %621
        %623 = vrot.lane.b32.xlu0 %v517, 32
        %v624 = vpop.permute.xlu0 %623
        %v625 = vmul.f32 %v471, %v618
        %v626 = vmul.f32 %v475, %v620
        %627 = vmatprep.subr.mxu0 0.0
        %628 = vmatpush1.msra.mxu0 %v537
        %629 = vmatprep.subr.mxu0 0.0
        %630 = vmatpush1.msra.mxu0 %v536
        %631 = vmatprep.subr.mxu0 0.0
        %632 = vmatpush1.msra.mxu0 %v535
        %633 = vmatprep.subr.mxu0 0.0
        %634 = vmatpush1.msra.mxu0 %v534
        %635 = vmatprep.subr.mxu0 0.0
        %636 = vmatpush1.msra.mxu0 %v533
        %637 = vmatprep.subr.mxu0 0.0
        %638 = vmatpush1.msra.mxu0 %v532
        %639 = vmatprep.subr.mxu0 0.0
        %640 = vmatpush1.msra.mxu0 %v531
        %641 = vmatprep.subr.mxu0 0.0
        %642 = vmatpush1.msra.mxu0 %v530
        %643 = vmatprep.subr.mxu0 0.0
        %644 = vmatpush1.msra.mxu0 %v529
        %645 = vmatprep.subr.mxu0 0.0
        %646 = vmatpush1.msra.mxu0 %v528
        %647 = vmatprep.subr.mxu0 0.0
        %648 = vmatpush1.msra.mxu0 %v527
        %649 = vmatprep.subr.mxu0 0.0
        %650 = vmatpush1.msra.mxu0 %v526
        %651 = vmatprep.subr.mxu0 0.0
        %652 = vmatpush1.msra.mxu0 %v525
        %653 = vmatprep.subr.mxu0 0.0
        %654 = vmatpush1.msra.mxu0 %v524
        %655 = vmatprep.subr.mxu0 0.0
        %656 = vmatpush1.msra.mxu0 %v523
        %657 = vmatprep.subr.mxu0 0.0
        %658 = vmatpush1.msra.mxu0 %v522
        %659 = vmatprep.subr.mxu0 0.0
        %660 = vmatpush2.msra.mxu0 0.0
        %661 = vmatprep.subr.mxu0 0.0
        %662 = vmatpush2.msra.mxu0 0.0
        %663 = vmatprep.subr.mxu0 0.0
        %664 = vmatpush2.msra.mxu0 0.0
        %665 = vmatprep.subr.mxu0 0.0
        %666 = vmatpush2.msra.mxu0 0.0
        %667 = vmatprep.subr.mxu0 0.0
        %668 = vmatpush2.msra.mxu0 0.0
        %669 = vmatprep.subr.mxu0 0.0
        %670 = vmatpush2.msra.mxu0 0.0
        %671 = vmatprep.subr.mxu0 0.0
        %672 = vmatpush2.msra.mxu0 0.0
        %673 = vmatprep.subr.mxu0 0.0
        %674 = vmatpush2.msra.mxu0 0.0
        %675 = vmatprep.subr.mxu0 0.0
        %676 = vmatpush2.msra.mxu0 0.0
        %677 = vmatprep.subr.mxu0 0.0
        %678 = vmatpush2.msra.mxu0 0.0
        %679 = vmatprep.subr.mxu0 0.0
        %680 = vmatpush2.msra.mxu0 0.0
        %681 = vmatprep.subr.mxu0 0.0
        %682 = vmatpush2.msra.mxu0 0.0
        %683 = vmatprep.subr.mxu0 0.0
        %684 = vmatpush2.msra.mxu0 0.0
        %685 = vmatprep.subr.mxu0 0.0
        %686 = vmatpush2.msra.mxu0 0.0
        %687 = vmatprep.subr.mxu0 0.0
        %688 = vmatpush2.msra.mxu0 0.0
        %689 = vmatprep.subr.mxu0 0.0
        %690 = vmatpush2.msra.mxu0 0.0
        %691 = vmatprep.mubr.f32.mxu0 0.0
        %692 = vmatmul.mubr.f32.gmra.mxu0 %v625
        %v693 = vpop.f32.mrf.mxu0
        %v694 = vadd.f32 0.0, %v693
        %v695 = vpop.f32.mrf.mxu0
        %696 = vmatprep.mubr.f32.mxu0 0.0
        %697 = vmatmul.mubr.f32.gmra.mxu0 %v626
        %v698 = vpop.f32.mrf.mxu0
        %v699 = vadd.f32 0.0, %v698
        %v700 = vpop.f32.mrf.mxu0
        %701 = vdwg.mxu0
        %v702 = vmul.f32 %v694, %v622
        %v703 = vmul.f32 %v699, %v624
        %v704 = vadd.f32 %v615, %v702
        %v705 = vadd.f32 %v616, %v703
        %706 = vrot.lane.b32.xlu0 %v473, 64
        %v707 = vpop.permute.xlu0 %706
        %708 = vrot.lane.b32.xlu0 %v477, 64
        %v709 = vpop.permute.xlu0 %708
        %710 = vrot.lane.b32.xlu0 %v514, 64
        %v711 = vpop.permute.xlu0 %710
        %712 = vrot.lane.b32.xlu0 %v517, 64
        %v713 = vpop.permute.xlu0 %712
        %v714 = vmul.f32 %v471, %v707
        %v715 = vmul.f32 %v475, %v709
        %716 = vmatprep.subr.mxu0 0.0
        %717 = vmatpush1.msra.mxu0 %v537
        %718 = vmatprep.subr.mxu0 0.0
        %719 = vmatpush1.msra.mxu0 %v536
        %720 = vmatprep.subr.mxu0 0.0
        %721 = vmatpush1.msra.mxu0 %v535
        %722 = vmatprep.subr.mxu0 0.0
        %723 = vmatpush1.msra.mxu0 %v534
        %724 = vmatprep.subr.mxu0 0.0
        %725 = vmatpush1.msra.mxu0 %v533
        %726 = vmatprep.subr.mxu0 0.0
        %727 = vmatpush1.msra.mxu0 %v532
        %728 = vmatprep.subr.mxu0 0.0
        %729 = vmatpush1.msra.mxu0 %v531
        %730 = vmatprep.subr.mxu0 0.0
        %731 = vmatpush1.msra.mxu0 %v530
        %732 = vmatprep.subr.mxu0 0.0
        %733 = vmatpush1.msra.mxu0 %v529
        %734 = vmatprep.subr.mxu0 0.0
        %735 = vmatpush1.msra.mxu0 %v528
        %736 = vmatprep.subr.mxu0 0.0
        %737 = vmatpush1.msra.mxu0 %v527
        %738 = vmatprep.subr.mxu0 0.0
        %739 = vmatpush1.msra.mxu0 %v526
        %740 = vmatprep.subr.mxu0 0.0
        %741 = vmatpush1.msra.mxu0 %v525
        %742 = vmatprep.subr.mxu0 0.0
        %743 = vmatpush1.msra.mxu0 %v524
        %744 = vmatprep.subr.mxu0 0.0
        %745 = vmatpush1.msra.mxu0 %v523
        %746 = vmatprep.subr.mxu0 0.0
        %747 = vmatpush1.msra.mxu0 %v522
        %748 = vmatprep.subr.mxu0 0.0
        %749 = vmatpush2.msra.mxu0 0.0
        %750 = vmatprep.subr.mxu0 0.0
        %751 = vmatpush2.msra.mxu0 0.0
        %752 = vmatprep.subr.mxu0 0.0
        %753 = vmatpush2.msra.mxu0 0.0
        %754 = vmatprep.subr.mxu0 0.0
        %755 = vmatpush2.msra.mxu0 0.0
        %756 = vmatprep.subr.mxu0 0.0
        %757 = vmatpush2.msra.mxu0 0.0
        %758 = vmatprep.subr.mxu0 0.0
        %759 = vmatpush2.msra.mxu0 0.0
        %760 = vmatprep.subr.mxu0 0.0
        %761 = vmatpush2.msra.mxu0 0.0
        %762 = vmatprep.subr.mxu0 0.0
        %763 = vmatpush2.msra.mxu0 0.0
        %764 = vmatprep.subr.mxu0 0.0
        %765 = vmatpush2.msra.mxu0 0.0
        %766 = vmatprep.subr.mxu0 0.0
        %767 = vmatpush2.msra.mxu0 0.0
        %768 = vmatprep.subr.mxu0 0.0
        %769 = vmatpush2.msra.mxu0 0.0
        %770 = vmatprep.subr.mxu0 0.0
        %771 = vmatpush2.msra.mxu0 0.0
        %772 = vmatprep.subr.mxu0 0.0
        %773 = vmatpush2.msra.mxu0 0.0
        %774 = vmatprep.subr.mxu0 0.0
        %775 = vmatpush2.msra.mxu0 0.0
        %776 = vmatprep.subr.mxu0 0.0
        %777 = vmatpush2.msra.mxu0 0.0
        %778 = vmatprep.subr.mxu0 0.0
        %779 = vmatpush2.msra.mxu0 0.0
        %780 = vmatprep.mubr.f32.mxu0 0.0
        %781 = vmatmul.mubr.f32.gmra.mxu0 %v714
        %v782 = vpop.f32.mrf.mxu0
        %v783 = vadd.f32 0.0, %v782
        %v784 = vpop.f32.mrf.mxu0
        %785 = vmatprep.mubr.f32.mxu0 0.0
        %786 = vmatmul.mubr.f32.gmra.mxu0 %v715
        %v787 = vpop.f32.mrf.mxu0
        %v788 = vadd.f32 0.0, %v787
        %v789 = vpop.f32.mrf.mxu0
        %790 = vdwg.mxu0
        %v791 = vmul.f32 %v783, %v711
        %v792 = vmul.f32 %v788, %v713
        %v793 = vadd.f32 %v704, %v791
        %v794 = vadd.f32 %v705, %v792
        %795 = vrot.lane.b32.xlu0 %v473, 96
        %v796 = vpop.permute.xlu0 %795
        %797 = vrot.lane.b32.xlu0 %v477, 96
        %v798 = vpop.permute.xlu0 %797
        %799 = vrot.lane.b32.xlu0 %v514, 96
        %v800 = vpop.permute.xlu0 %799
        %801 = vrot.lane.b32.xlu0 %v517, 96
        %v802 = vpop.permute.xlu0 %801
        %v803 = vmul.f32 %v471, %v796
        %v804 = vmul.f32 %v475, %v798
        %805 = vmatprep.subr.mxu0 0.0
        %806 = vmatpush1.msra.mxu0 %v537
        %807 = vmatprep.subr.mxu0 0.0
        %808 = vmatpush1.msra.mxu0 %v536
        %809 = vmatprep.subr.mxu0 0.0
        %810 = vmatpush1.msra.mxu0 %v535
        %811 = vmatprep.subr.mxu0 0.0
        %812 = vmatpush1.msra.mxu0 %v534
        %813 = vmatprep.subr.mxu0 0.0
        %814 = vmatpush1.msra.mxu0 %v533
        %815 = vmatprep.subr.mxu0 0.0
        %816 = vmatpush1.msra.mxu0 %v532
        %817 = vmatprep.subr.mxu0 0.0
        %818 = vmatpush1.msra.mxu0 %v531
        %819 = vmatprep.subr.mxu0 0.0
        %820 = vmatpush1.msra.mxu0 %v530
        %821 = vmatprep.subr.mxu0 0.0
        %822 = vmatpush1.msra.mxu0 %v529
        %823 = vmatprep.subr.mxu0 0.0
        %824 = vmatpush1.msra.mxu0 %v528
        %825 = vmatprep.subr.mxu0 0.0
        %826 = vmatpush1.msra.mxu0 %v527
        %827 = vmatprep.subr.mxu0 0.0
        %828 = vmatpush1.msra.mxu0 %v526
        %829 = vmatprep.subr.mxu0 0.0
        %830 = vmatpush1.msra.mxu0 %v525
        %831 = vmatprep.subr.mxu0 0.0
        %832 = vmatpush1.msra.mxu0 %v524
        %833 = vmatprep.subr.mxu0 0.0
        %834 = vmatpush1.msra.mxu0 %v523
        %835 = vmatprep.subr.mxu0 0.0
        %836 = vmatpush1.msra.mxu0 %v522
        %837 = vmatprep.subr.mxu0 0.0
        %838 = vmatpush2.msra.mxu0 0.0
        %839 = vmatprep.subr.mxu0 0.0
        %840 = vmatpush2.msra.mxu0 0.0
        %841 = vmatprep.subr.mxu0 0.0
        %842 = vmatpush2.msra.mxu0 0.0
        %843 = vmatprep.subr.mxu0 0.0
        %844 = vmatpush2.msra.mxu0 0.0
        %845 = vmatprep.subr.mxu0 0.0
        %846 = vmatpush2.msra.mxu0 0.0
        %847 = vmatprep.subr.mxu0 0.0
        %848 = vmatpush2.msra.mxu0 0.0
        %849 = vmatprep.subr.mxu0 0.0
        %850 = vmatpush2.msra.mxu0 0.0
        %851 = vmatprep.subr.mxu0 0.0
        %852 = vmatpush2.msra.mxu0 0.0
        %853 = vmatprep.subr.mxu0 0.0
        %854 = vmatpush2.msra.mxu0 0.0
        %855 = vmatprep.subr.mxu0 0.0
        %856 = vmatpush2.msra.mxu0 0.0
        %857 = vmatprep.subr.mxu0 0.0
        %858 = vmatpush2.msra.mxu0 0.0
        %859 = vmatprep.subr.mxu0 0.0
        %860 = vmatpush2.msra.mxu0 0.0
        %861 = vmatprep.subr.mxu0 0.0
        %862 = vmatpush2.msra.mxu0 0.0
        %863 = vmatprep.subr.mxu0 0.0
        %864 = vmatpush2.msra.mxu0 0.0
        %865 = vmatprep.subr.mxu0 0.0
        %866 = vmatpush2.msra.mxu0 0.0
        %867 = vmatprep.subr.mxu0 0.0
        %868 = vmatpush2.msra.mxu0 0.0
        %869 = vmatprep.mubr.f32.mxu0 0.0
        %870 = vmatmul.mubr.f32.gmra.mxu0 %v803
        %v871 = vpop.f32.mrf.mxu0
        %v872 = vadd.f32 0.0, %v871
        %v873 = vpop.f32.mrf.mxu0
        %874 = vmatprep.mubr.f32.mxu0 0.0
        %875 = vmatmul.mubr.f32.gmra.mxu0 %v804
        %v876 = vpop.f32.mrf.mxu0
        %v877 = vadd.f32 0.0, %v876
        %v878 = vpop.f32.mrf.mxu0
        %879 = vdwg.mxu0
        %v880 = vmul.f32 %v872, %v800
        %v881 = vmul.f32 %v877, %v802
        %v882 = vadd.f32 %v793, %v880
        %v883 = vadd.f32 %v794, %v881
        %884 = vst [vmem:[%s259] sm:$0xff] %v882
        %885 = vst [vmem:[%s259 + $0x8] sm:$0xff] %v883
        %s886 = sand.u32 %s120, 1
        %s887 = scalar_lea.sflag [#allocation4], %s886
        %s888 = sand.u32 %s120, 1
        %s889 = smul.addr %s888, 16
        %s890 = scalar_lea.vmem [#allocation10], %s889
        // Predicated region
        $region53: #{tpu_custom_call.1} parent=35 // pred_check
          %p891 = pneg %p130
        $region54: #{tpu_custom_call.1} parent=35 // pred_check_branch
          %893 = sbr.rel (%p891) target = $region56
        $region55: #{tpu_custom_call.1} parent=35 // pred_region
          %s894 = smul.u32 2, %s23
          %s896 = ssub.s32 256, 256
          %897 = vsyncadd %s887, %s896
          %s898 = smul.addr %s894, 128
          %s899 = scalar_lea.hbm %s4, %s898
          %s900 = sshll.u32 %s890, 4
          %s901 = int_to_ptr.vmem [resolvable:$true] %s900
          %906 = dma.vmem_to_hbm [thread:$0]  %s901, 256, %s899, %s887, 128, 128, 8
        $region56: #{tpu_custom_call.1} parent=35 // pred_fallthru
          _
      $region36: #{tpu_custom_call.1} parent=5 // pred_fallthru
        _
      %p907 = scmp.le.s32.totalorder 2, %s18
      // Predicated region
      $region57: #{tpu_custom_call.1} parent=5 // pred_check
        %p908 = pneg %p907
      $region58: #{tpu_custom_call.1} parent=5 // pred_check_branch
        %910 = sbr.rel (%p908) target = $region60
      $region59: #{tpu_custom_call.1} parent=5 // pred_region
        %s911 = ssub.s32 %s18, 2
        // Predicated region
        $region61: #{tpu_custom_call.1} parent=59 // pred_check
          %p912 = pneg %p136
        $region62: #{tpu_custom_call.1} parent=59 // pred_check_branch
          %914 = sbr.rel (%p912) target = $region64
        $region63: #{tpu_custom_call.1} parent=59 // pred_region
          %s915 = sand.u32 %s121, 1
          %s916 = scalar_lea.sflag [#allocation4], %s915
          %s917 = sand.u32 %s121, 1
          %s918 = smul.addr %s917, 16
          %s919 = scalar_lea.vmem [#allocation10], %s918
          %920 = dma.done %s916, 256
        $region64: #{tpu_custom_call.1} parent=59 // pred_fallthru
          _
      $region60: #{tpu_custom_call.1} parent=5 // pred_fallthru
        _
    $region6: #{tpu_custom_call.1} parent=1 // loop_footer
      %s22 = sadd.s32 1, %s18
    $region7: #{tpu_custom_call.1} parent=1 // loop_footer_branch
      %17 = sbr.rel target = $region3
    $region8: #{tpu_custom_call.1} parent=1 // loop_exit
      _
    %921 = vsyncpa [#allocation3], 1
    %s922 = scalar_lea.sflag [#allocation3], 1
    %923 = vsyncpa %s922, 1
    %924 = vsyncpa [#allocation6], 1
    %925 = vsyncpa [#allocation9], 1
    %926 = vsyncpa [#allocation4], 1
    %s927 = scalar_lea.sflag [#allocation4], 1
    %928 = vsyncpa %s927, 1

</llo_original>
